<compile_context>
chip_gen: v5e
topology: v5e:2x2
jax: 0.10.0
libtpu: 0.0.40
codegen_flags: <defaults>
</compile_context>

<pallas_src>
import functools

import jax
import jax.numpy as jnp
import numpy as np
from jax.experimental import pallas as pl
from jax.experimental.pallas import tpu as pltpu


def block_kernel(x_ref, gamma_ref, beta_ref, proj_ref, rowmask_ref, w_ref, b_ref,
                 o_ref, im_ref, *, C, eps):
    _, H, WC = x_ref.shape                                  # block = (1, H, W*C)

    x = x_ref[0].astype(jnp.float32)                        # (H, W*C)

    # -------- GroupNorm (per-(sample, group), biased variance) ---------------
    # proj_ref is the precomputed lane->group-average->lane projection matrix.
    # NOTE: E[x^2]-E[x]^2 in f32 — fine for normalized activations; switch to a
    # two-pass variance if inputs can be huge-magnitude.
    col_sum = jnp.sum(x, axis=0, keepdims=True)             # (1, W*C)
    col_sq = jnp.sum(x * x, axis=0, keepdims=True)          # (1, W*C)
    mean_wc = jnp.dot(col_sum, proj_ref[...], preferred_element_type=jnp.float32)
    sq_wc = jnp.dot(col_sq, proj_ref[...], preferred_element_type=jnp.float32)
    var_wc = sq_wc - mean_wc * mean_wc
    inv_wc = jax.lax.rsqrt(var_wc + eps)
    scale = gamma_ref[...] * inv_wc                         # (1, W*C)
    shift = beta_ref[...] - mean_wc * scale
    y = x * scale + shift                                   # (H, W*C), f32

    # -------- Swish -----------------------------------------------------------
    y = y * jax.nn.sigmoid(y)

    # -------- Conv2d 3x3, padding=1: im2col + single MXU matmul --------------
    # Shifts along H are sublane rolls (+ row-border mask); shifts along W are
    # lane rolls by dx*C (wraparound is killed by zeroed rows of the
    # block-diagonal weight, so no column mask is needed in-kernel).
    for kh in range(3):
        dy = kh - 1
        if dy == 0:
            yrow = y
        else:
            yrow = pltpu.roll(y, shift=(-dy) % H, axis=0) * rowmask_ref[kh]
        for kw in range(3):
            dx = kw - 1
            tap = yrow if dx == 0 else pltpu.roll(yrow, shift=(-dx * C) % WC, axis=1)
            t = kh * 3 + kw
            im_ref[:, t * WC:(t + 1) * WC] = tap.astype(im_ref.dtype)   # bf16 cast

    acc = jnp.dot(im_ref[...], w_ref[...], preferred_element_type=jnp.float32)
    o_ref[0] = (acc + b_ref[...]).astype(o_ref.dtype)       # (H, W*Cout)


def _vmem_limit_bytes(H, WC, WCout, mxu_itemsize):
    x_blk = H * WC * 4
    out_blk = H * WCout * 4
    w_blk = 9 * WC * WCout * mxu_itemsize
    proj_blk = WC * WC * 4
    small = (2 * WC + WCout + 3 * H) * 4
    scratch = H * 9 * WC * mxu_itemsize
    need = 2 * (x_blk + out_blk + w_blk + proj_blk + small) + scratch  # double-buffered
    return int(max(2 * need, 32 * 1024 * 1024))             # headroom, >= scoped default


def block_forward_nhwc(x_nhwc, gamma, beta, conv_w, conv_b, *, groups, eps=1e-5,
                       mxu_dtype=jnp.bfloat16):
    """GroupNorm -> Swish -> Conv3x3(pad=1) on NHWC input. No layout transposes."""
    N, H, W, C = x_nhwc.shape
    Cout = conv_w.shape[0]
    assert C % groups == 0
    Cg = C // groups
    WC, WCout = W * C, W * Cout

    # Free reshape: fold W into the lane axis (channels-last already).
    x = x_nhwc.reshape(N, H, WC)

    # Per-lane affine / bias parameters replicated across W (hoisted to wrapper).
    gamma_wc = jnp.tile(gamma.astype(jnp.float32), W).reshape(1, WC)
    beta_wc = jnp.tile(beta.astype(jnp.float32), W).reshape(1, WC)
    bias_wc = jnp.tile(conv_b.astype(jnp.float32), W).reshape(1, WCout)

    # Group-average projection: lane -> group mean broadcast back to lanes.
    grp = (jnp.arange(WC) % C) // Cg
    proj = (grp[:, None] == grp[None, :]).astype(jnp.float32) / float(H * W * Cg)

    # Row (dy) border-validity masks, one per kernel row.
    h_idx = jnp.arange(H)
    rowmask = jnp.stack(
        [((h_idx + dy >= 0) & (h_idx + dy < H)).astype(jnp.float32)
         for dy in (-1, 0, 1)], axis=0).reshape(3, H, 1)

    # Block-diagonal im2col weight (9*W*C, W*Cout) with the dx (column) border
    # validity folded in as zeroed rows.  bf16 for native MXU rate.
    w_taps = jnp.transpose(conv_w, (2, 3, 1, 0)).reshape(9, C, Cout).astype(jnp.float32)
    w_idx = jnp.arange(W)
    wvalid = jnp.stack(
        [((w_idx + (t % 3) - 1 >= 0) & (w_idx + (t % 3) - 1 < W)).astype(jnp.float32)
         for t in range(9)], axis=0)                          # (9, W)
    bd = jnp.einsum('wv,tio,tw->twivo', jnp.eye(W, dtype=jnp.float32), w_taps, wvalid)
    bd = bd.reshape(9 * WC, WCout).astype(mxu_dtype)

    kernel = functools.partial(block_kernel, C=C, eps=eps)
    mxu_itemsize = jnp.dtype(mxu_dtype).itemsize
    out = pl.pallas_call(
        kernel,
        out_shape=jax.ShapeDtypeStruct((N, H, WCout), jnp.float32),
        grid_spec=pltpu.PrefetchScalarGridSpec(
            num_scalar_prefetch=0,
            grid=(N,),
            in_specs=[
                pl.BlockSpec((1, H, WC), lambda n: (n, 0, 0)),       # x
                pl.BlockSpec((1, WC), lambda n: (0, 0)),             # gamma
                pl.BlockSpec((1, WC), lambda n: (0, 0)),             # beta
                pl.BlockSpec((WC, WC), lambda n: (0, 0)),            # group proj
                pl.BlockSpec((3, H, 1), lambda n: (0, 0, 0)),        # row masks
                pl.BlockSpec((9 * WC, WCout), lambda n: (0, 0)),     # conv weight
                pl.BlockSpec((1, WCout), lambda n: (0, 0)),          # conv bias
            ],
            out_specs=pl.BlockSpec((1, H, WCout), lambda n: (n, 0, 0)),
            scratch_shapes=[pltpu.VMEM((H, 9 * WC), mxu_dtype)],     # im2col buffer
        ),
        compiler_params=pltpu.CompilerParams(
            dimension_semantics=("parallel",),
            vmem_limit_bytes=_vmem_limit_bytes(H, WC, WCout, mxu_itemsize),
        ),
    )(x, gamma_wc, beta_wc, proj, rowmask, bd, bias_wc)

    return out.reshape(N, H, W, Cout)                        # free reshape (NHWC)


def block_forward_nchw(x_nchw, gamma, beta, conv_w, conv_b, *, groups, eps=1e-5):
    """PyTorch-layout convenience wrapper. In a channels-last model call
    block_forward_nhwc directly and skip both transposes."""
    x_nhwc = jnp.transpose(x_nchw, (0, 2, 3, 1))
    out_nhwc = block_forward_nhwc(x_nhwc, gamma, beta, conv_w, conv_b,
                                  groups=groups, eps=eps)
    return jnp.transpose(out_nhwc, (0, 3, 1, 2))


def ref_forward(x_nchw, gamma, beta, conv_w, conv_b, groups, eps):
    """Pure-JAX reference matching PyTorch semantics (f32)."""
    N, C, H, W = x_nchw.shape
    xg = x_nchw.reshape(N, groups, C // groups, H, W)
    mean = xg.mean(axis=(2, 3, 4), keepdims=True)
    var = xg.var(axis=(2, 3, 4), keepdims=True)              # biased, like nn.GroupNorm
    xn = ((xg - mean) / jnp.sqrt(var + eps)).reshape(N, C, H, W)
    xn = xn * gamma[None, :, None, None] + beta[None, :, None, None]
    act = xn * jax.nn.sigmoid(xn)
    out = jax.lax.conv_general_dilated(
        act, conv_w, window_strides=(1, 1), padding="SAME",
        dimension_numbers=("NCHW", "OIHW", "NCHW"))
    return out + conv_b[None, :, None, None]


if __name__ == "__main__":
    key = jax.random.PRNGKey(0)
    k1, k2, k3, k4, k5 = jax.random.split(key, 5)

    # Block(dim=8, dim_out=8, groups=4, dropout=0); x: (N=2, C=8, H=16, W=16)
    N, dim, dim_out, H, W, groups = 2, 8, 8, 16, 16, 4
    eps = 1e-5

    x_nchw = jax.random.normal(k1, (N, dim, H, W), jnp.float32)
    gamma = 1.0 + 0.1 * jax.random.normal(k2, (dim,), jnp.float32)
    beta = 0.1 * jax.random.normal(k3, (dim,), jnp.float32)
    bound = 1.0 / np.sqrt(dim * 9)
    conv_w = jax.random.uniform(k4, (dim_out, dim, 3, 3), jnp.float32, -bound, bound)
    conv_b = jax.random.uniform(k5, (dim_out,), jnp.float32, -bound, bound)

    # One-time boundary transpose to channels-last; a channels-last model would
    # keep activations NHWC between Blocks and never pay this.
    x_nhwc = jnp.transpose(x_nchw, (0, 2, 3, 1))

    out_nhwc = block_forward_nhwc(x_nhwc, gamma, beta, conv_w, conv_b,
                                  groups=groups, eps=eps)
    out_nhwc = jax.block_until_ready(out_nhwc)

    ref_nhwc = jnp.transpose(ref_forward(x_nchw, gamma, beta, conv_w, conv_b,
                                         groups, eps), (0, 2, 3, 1))
    # bf16 MXU inputs (f32 accumulation) -> relaxed tolerance vs. the f32 reference.
    np.testing.assert_allclose(np.asarray(out_nhwc), np.asarray(ref_nhwc),
                               atol=2e-2, rtol=2e-2)
    print("KERNEL_OK")
</pallas_src>

<mosaic_0001>
module attributes {stable_mosaic.version = 11 : i64} {
  func.func @block_kernel(%arg0: i32, %arg1: memref<1x16x128xf32, #tpu.memory_space<vmem>>, %arg2: memref<1x128xf32, #tpu.memory_space<vmem>>, %arg3: memref<1x128xf32, #tpu.memory_space<vmem>>, %arg4: memref<128x128xf32, #tpu.memory_space<vmem>>, %arg5: memref<3x16x1xf32, #tpu.memory_space<vmem>>, %arg6: memref<1152x128xbf16, #tpu.memory_space<vmem>>, %arg7: memref<1x128xf32, #tpu.memory_space<vmem>>, %arg8: memref<1x16x128xf32, #tpu.memory_space<vmem>>, %arg9: memref<16x1152xbf16, #tpu.memory_space<vmem>>) attributes {dimension_semantics = [#tpu.dimension_semantics<parallel>], iteration_bounds = array<i64: 2>, scalar_prefetch = 0 : i64, scratch_operands = 1 : i64, tpu.core_type = #tpu.core_type<tc>, window_params = [{transform_indices = @transform_0, window_bounds = array<i64: 1, 16, 128>}, {pipeline_mode = #tpu.pipeline_mode<synchronous>, transform_indices = @transform_1, window_bounds = array<i64: 1, 128>}, {pipeline_mode = #tpu.pipeline_mode<synchronous>, transform_indices = @transform_2, window_bounds = array<i64: 1, 128>}, {pipeline_mode = #tpu.pipeline_mode<synchronous>, transform_indices = @transform_3, window_bounds = array<i64: 128, 128>}, {pipeline_mode = #tpu.pipeline_mode<synchronous>, transform_indices = @transform_4, window_bounds = array<i64: 3, 16, 1>}, {pipeline_mode = #tpu.pipeline_mode<synchronous>, transform_indices = @transform_5, window_bounds = array<i64: 1152, 128>}, {pipeline_mode = #tpu.pipeline_mode<synchronous>, transform_indices = @transform_6, window_bounds = array<i64: 1, 128>}, {transform_indices = @transform_7, window_bounds = array<i64: 1, 16, 128>}]} {
    %c0 = arith.constant 0 : index
    %c0_0 = arith.constant 0 : index
    %c0_1 = arith.constant 0 : index
    %0 = vector.load %arg1[%c0, %c0_0, %c0_1] : memref<1x16x128xf32, #tpu.memory_space<vmem>>, vector<1x16x128xf32>
    %1 = vector.shape_cast %0 : vector<1x16x128xf32> to vector<16x128xf32>
    %cst = arith.constant dense<0.000000e+00> : vector<128xf32>
    %2 = vector.multi_reduction <add>, %1, %cst [0] : vector<16x128xf32> to vector<128xf32>
    %3 = vector.shape_cast %2 : vector<128xf32> to vector<1x128xf32>
    %4 = arith.mulf %1, %1 : vector<16x128xf32>
    %cst_2 = arith.constant dense<0.000000e+00> : vector<128xf32>
    %5 = vector.multi_reduction <add>, %4, %cst_2 [0] : vector<16x128xf32> to vector<128xf32>
    %6 = vector.shape_cast %5 : vector<128xf32> to vector<1x128xf32>
    %c0_3 = arith.constant 0 : index
    %c0_4 = arith.constant 0 : index
    %7 = vector.load %arg4[%c0_3, %c0_4] : memref<128x128xf32, #tpu.memory_space<vmem>>, vector<128x128xf32>
    %cst_5 = arith.constant dense<0.000000e+00> : vector<1x128xf32>
    %8 = tpu.matmul %3, %7, %cst_5 {dimension_numbers = #tpu.dot_dimension_numbers<[1], [0], [0], [1], [0, 0, 1, 1], [], []>} : vector<1x128xf32>, vector<128x128xf32>, vector<1x128xf32> -> vector<1x128xf32>
    %c0_6 = arith.constant 0 : index
    %c0_7 = arith.constant 0 : index
    %9 = vector.load %arg4[%c0_6, %c0_7] : memref<128x128xf32, #tpu.memory_space<vmem>>, vector<128x128xf32>
    %cst_8 = arith.constant dense<0.000000e+00> : vector<1x128xf32>
    %10 = tpu.matmul %6, %9, %cst_8 {dimension_numbers = #tpu.dot_dimension_numbers<[1], [0], [0], [1], [0, 0, 1, 1], [], []>} : vector<1x128xf32>, vector<128x128xf32>, vector<1x128xf32> -> vector<1x128xf32>
    %11 = arith.mulf %8, %8 : vector<1x128xf32>
    %12 = arith.subf %10, %11 : vector<1x128xf32>
    %cst_9 = arith.constant 9.99999974E-6 : f32
    %13 = vector.broadcast %cst_9 : f32 to vector<1x128xf32>
    %14 = arith.addf %12, %13 : vector<1x128xf32>
    %15 = math.rsqrt %14 : vector<1x128xf32>
    %c0_10 = arith.constant 0 : index
    %c0_11 = arith.constant 0 : index
    %16 = vector.load %arg2[%c0_10, %c0_11] : memref<1x128xf32, #tpu.memory_space<vmem>>, vector<1x128xf32>
    %17 = arith.mulf %16, %15 : vector<1x128xf32>
    %c0_12 = arith.constant 0 : index
    %c0_13 = arith.constant 0 : index
    %18 = vector.load %arg3[%c0_12, %c0_13] : memref<1x128xf32, #tpu.memory_space<vmem>>, vector<1x128xf32>
    %19 = arith.mulf %8, %17 : vector<1x128xf32>
    %20 = arith.subf %18, %19 : vector<1x128xf32>
    %21 = vector.broadcast %17 : vector<1x128xf32> to vector<16x128xf32>
    %22 = arith.mulf %1, %21 : vector<16x128xf32>
    %23 = vector.broadcast %20 : vector<1x128xf32> to vector<16x128xf32>
    %24 = arith.addf %22, %23 : vector<16x128xf32>
    %25 = arith.negf %24 : vector<16x128xf32>
    %26 = math.exp %25 : vector<16x128xf32>
    %cst_14 = arith.constant 1.000000e+00 : f32
    %27 = vector.broadcast %cst_14 : f32 to vector<16x128xf32>
    %28 = arith.addf %27, %26 : vector<16x128xf32>
    %29 = arith.divf %27, %28 : vector<16x128xf32>
    %30 = arith.mulf %24, %29 : vector<16x128xf32>
    %c1_i32 = arith.constant 1 : i32
    %31 = tpu.dynamic_rotate %30 by %c1_i32 dim 0 : vector<16x128xf32>, i32 -> vector<16x128xf32>
    %c0_15 = arith.constant 0 : index
    %c0_16 = arith.constant 0 : index
    %c0_17 = arith.constant 0 : index
    %32 = vector.load %arg5[%c0_15, %c0_16, %c0_17] : memref<3x16x1xf32, #tpu.memory_space<vmem>>, vector<1x16x1xf32>
    %33 = vector.shape_cast %32 : vector<1x16x1xf32> to vector<16x1xf32>
    %34 = vector.broadcast %33 : vector<16x1xf32> to vector<16x128xf32>
    %35 = arith.mulf %31, %34 : vector<16x128xf32>
    %c8_i32 = arith.constant 8 : i32
    %36 = tpu.dynamic_rotate %35 by %c8_i32 dim 1 : vector<16x128xf32>, i32 -> vector<16x128xf32>
    %37 = arith.truncf %36 : vector<16x128xf32> to vector<16x128xbf16>
    %c0_18 = arith.constant 0 : index
    %c0_19 = arith.constant 0 : index
    %38 = vector.load %arg9[%c0_18, %c0_19] : memref<16x1152xbf16, #tpu.memory_space<vmem>>, vector<16x128xbf16>
    tpu.vector_store %arg9[%c0_18, %c0_19], %37 {strides = array<i32>} : memref<16x1152xbf16, #tpu.memory_space<vmem>>, vector<16x128xbf16>,
    %39 = arith.truncf %35 : vector<16x128xf32> to vector<16x128xbf16>
    %c0_20 = arith.constant 0 : index
    %c128 = arith.constant 128 : index
    %40 = vector.load %arg9[%c0_20, %c128] : memref<16x1152xbf16, #tpu.memory_space<vmem>>, vector<16x128xbf16>
    tpu.vector_store %arg9[%c0_20, %c128], %39 {strides = array<i32>} : memref<16x1152xbf16, #tpu.memory_space<vmem>>, vector<16x128xbf16>,
    %c120_i32 = arith.constant 120 : i32
    %41 = tpu.dynamic_rotate %35 by %c120_i32 dim 1 : vector<16x128xf32>, i32 -> vector<16x128xf32>
    %42 = arith.truncf %41 : vector<16x128xf32> to vector<16x128xbf16>
    %c0_21 = arith.constant 0 : index
    %c256 = arith.constant 256 : index
    %43 = vector.load %arg9[%c0_21, %c256] : memref<16x1152xbf16, #tpu.memory_space<vmem>>, vector<16x128xbf16>
    tpu.vector_store %arg9[%c0_21, %c256], %42 {strides = array<i32>} : memref<16x1152xbf16, #tpu.memory_space<vmem>>, vector<16x128xbf16>,
    %c8_i32_22 = arith.constant 8 : i32
    %44 = tpu.dynamic_rotate %30 by %c8_i32_22 dim 1 : vector<16x128xf32>, i32 -> vector<16x128xf32>
    %45 = arith.truncf %44 : vector<16x128xf32> to vector<16x128xbf16>
    %c0_23 = arith.constant 0 : index
    %c384 = arith.constant 384 : index
    %46 = vector.load %arg9[%c0_23, %c384] : memref<16x1152xbf16, #tpu.memory_space<vmem>>, vector<16x128xbf16>
    tpu.vector_store %arg9[%c0_23, %c384], %45 {strides = array<i32>} : memref<16x1152xbf16, #tpu.memory_space<vmem>>, vector<16x128xbf16>,
    %47 = arith.truncf %30 : vector<16x128xf32> to vector<16x128xbf16>
    %c0_24 = arith.constant 0 : index
    %c512 = arith.constant 512 : index
    %48 = vector.load %arg9[%c0_24, %c512] : memref<16x1152xbf16, #tpu.memory_space<vmem>>, vector<16x128xbf16>
    tpu.vector_store %arg9[%c0_24, %c512], %47 {strides = array<i32>} : memref<16x1152xbf16, #tpu.memory_space<vmem>>, vector<16x128xbf16>,
    %c120_i32_25 = arith.constant 120 : i32
    %49 = tpu.dynamic_rotate %30 by %c120_i32_25 dim 1 : vector<16x128xf32>, i32 -> vector<16x128xf32>
    %50 = arith.truncf %49 : vector<16x128xf32> to vector<16x128xbf16>
    %c0_26 = arith.constant 0 : index
    %c640 = arith.constant 640 : index
    %51 = vector.load %arg9[%c0_26, %c640] : memref<16x1152xbf16, #tpu.memory_space<vmem>>, vector<16x128xbf16>
    tpu.vector_store %arg9[%c0_26, %c640], %50 {strides = array<i32>} : memref<16x1152xbf16, #tpu.memory_space<vmem>>, vector<16x128xbf16>,
    %c15_i32 = arith.constant 15 : i32
    %52 = tpu.dynamic_rotate %30 by %c15_i32 dim 0 : vector<16x128xf32>, i32 -> vector<16x128xf32>
    %c2 = arith.constant 2 : index
    %c0_27 = arith.constant 0 : index
    %c0_28 = arith.constant 0 : index
    %53 = vector.load %arg5[%c2, %c0_27, %c0_28] : memref<3x16x1xf32, #tpu.memory_space<vmem>>, vector<1x16x1xf32>
    %54 = vector.shape_cast %53 : vector<1x16x1xf32> to vector<16x1xf32>
    %55 = vector.broadcast %54 : vector<16x1xf32> to vector<16x128xf32>
    %56 = arith.mulf %52, %55 : vector<16x128xf32>
    %c8_i32_29 = arith.constant 8 : i32
    %57 = tpu.dynamic_rotate %56 by %c8_i32_29 dim 1 : vector<16x128xf32>, i32 -> vector<16x128xf32>
    %58 = arith.truncf %57 : vector<16x128xf32> to vector<16x128xbf16>
    %c0_30 = arith.constant 0 : index
    %c768 = arith.constant 768 : index
    %59 = vector.load %arg9[%c0_30, %c768] : memref<16x1152xbf16, #tpu.memory_space<vmem>>, vector<16x128xbf16>
    tpu.vector_store %arg9[%c0_30, %c768], %58 {strides = array<i32>} : memref<16x1152xbf16, #tpu.memory_space<vmem>>, vector<16x128xbf16>,
    %60 = arith.truncf %56 : vector<16x128xf32> to vector<16x128xbf16>
    %c0_31 = arith.constant 0 : index
    %c896 = arith.constant 896 : index
    %61 = vector.load %arg9[%c0_31, %c896] : memref<16x1152xbf16, #tpu.memory_space<vmem>>, vector<16x128xbf16>
    tpu.vector_store %arg9[%c0_31, %c896], %60 {strides = array<i32>} : memref<16x1152xbf16, #tpu.memory_space<vmem>>, vector<16x128xbf16>,
    %c120_i32_32 = arith.constant 120 : i32
    %62 = tpu.dynamic_rotate %56 by %c120_i32_32 dim 1 : vector<16x128xf32>, i32 -> vector<16x128xf32>
    %63 = arith.truncf %62 : vector<16x128xf32> to vector<16x128xbf16>
    %c0_33 = arith.constant 0 : index
    %c1024 = arith.constant 1024 : index
    %64 = vector.load %arg9[%c0_33, %c1024] : memref<16x1152xbf16, #tpu.memory_space<vmem>>, vector<16x128xbf16>
    tpu.vector_store %arg9[%c0_33, %c1024], %63 {strides = array<i32>} : memref<16x1152xbf16, #tpu.memory_space<vmem>>, vector<16x128xbf16>,
    %c0_34 = arith.constant 0 : index
    %c0_35 = arith.constant 0 : index
    %65 = vector.load %arg9[%c0_34, %c0_35] : memref<16x1152xbf16, #tpu.memory_space<vmem>>, vector<16x1152xbf16>
    %c0_36 = arith.constant 0 : index
    %c0_37 = arith.constant 0 : index
    %66 = vector.load %arg6[%c0_36, %c0_37] : memref<1152x128xbf16, #tpu.memory_space<vmem>>, vector<1152x128xbf16>
    %cst_38 = arith.constant dense<0.000000e+00> : vector<16x128xf32>
    %67 = tpu.matmul %65, %66, %cst_38 {dimension_numbers = #tpu.dot_dimension_numbers<[1], [0], [0], [1], [0, 0, 1, 1], [], []>} : vector<16x1152xbf16>, vector<1152x128xbf16>, vector<16x128xf32> -> vector<16x128xf32>
    %c0_39 = arith.constant 0 : index
    %c0_40 = arith.constant 0 : index
    %68 = vector.load %arg7[%c0_39, %c0_40] : memref<1x128xf32, #tpu.memory_space<vmem>>, vector<1x128xf32>
    %69 = vector.broadcast %68 : vector<1x128xf32> to vector<16x128xf32>
    %70 = arith.addf %67, %69 : vector<16x128xf32>
    %c0_41 = arith.constant 0 : index
    %c0_42 = arith.constant 0 : index
    %c0_43 = arith.constant 0 : index
    %71 = vector.load %arg8[%c0_41, %c0_42, %c0_43] : memref<1x16x128xf32, #tpu.memory_space<vmem>>, vector<1x16x128xf32>
    %72 = vector.shape_cast %71 : vector<1x16x128xf32> to vector<16x128xf32>
    %73 = vector.shape_cast %70 : vector<16x128xf32> to vector<1x16x128xf32>
    tpu.vector_store %arg8[%c0_41, %c0_42, %c0_43], %73 {strides = array<i32>} : memref<1x16x128xf32, #tpu.memory_space<vmem>>, vector<1x16x128xf32>,
    return
  }
  func.func @transform_0(%arg0: i32) -> (i32, i32, i32) {
    %c0_i32 = arith.constant 0 : i32
    %c0_i32_0 = arith.constant 0 : i32
    %c0_i32_1 = arith.constant 0 : i32
    return %arg0, %c0_i32, %c0_i32_0 : i32, i32, i32
  }
  func.func @transform_1(%arg0: i32) -> (i32, i32) {
    %c0_i32 = arith.constant 0 : i32
    %c0_i32_0 = arith.constant 0 : i32
    %c0_i32_1 = arith.constant 0 : i32
    return %c0_i32, %c0_i32_0 : i32, i32
  }
  func.func @transform_2(%arg0: i32) -> (i32, i32) {
    %c0_i32 = arith.constant 0 : i32
    %c0_i32_0 = arith.constant 0 : i32
    %c0_i32_1 = arith.constant 0 : i32
    return %c0_i32, %c0_i32_0 : i32, i32
  }
  func.func @transform_3(%arg0: i32) -> (i32, i32) {
    %c0_i32 = arith.constant 0 : i32
    %c0_i32_0 = arith.constant 0 : i32
    %c0_i32_1 = arith.constant 0 : i32
    return %c0_i32, %c0_i32_0 : i32, i32
  }
  func.func @transform_4(%arg0: i32) -> (i32, i32, i32) {
    %c0_i32 = arith.constant 0 : i32
    %c0_i32_0 = arith.constant 0 : i32
    %c0_i32_1 = arith.constant 0 : i32
    %c0_i32_2 = arith.constant 0 : i32
    return %c0_i32, %c0_i32_0, %c0_i32_1 : i32, i32, i32
  }
  func.func @transform_5(%arg0: i32) -> (i32, i32) {
    %c0_i32 = arith.constant 0 : i32
    %c0_i32_0 = arith.constant 0 : i32
    %c0_i32_1 = arith.constant 0 : i32
    return %c0_i32, %c0_i32_0 : i32, i32
  }
  func.func @transform_6(%arg0: i32) -> (i32, i32) {
    %c0_i32 = arith.constant 0 : i32
    %c0_i32_0 = arith.constant 0 : i32
    %c0_i32_1 = arith.constant 0 : i32
    return %c0_i32, %c0_i32_0 : i32, i32
  }
  func.func @transform_7(%arg0: i32) -> (i32, i32, i32) {
    %c0_i32 = arith.constant 0 : i32
    %c0_i32_0 = arith.constant 0 : i32
    %c0_i32_1 = arith.constant 0 : i32
    return %arg0, %c0_i32, %c0_i32_0 : i32, i32, i32
  }
}

</mosaic_0001>

<llo_original>
// kernel: tpu_custom_call.1
$region0: #{tpu_custom_call.1}
  #allocation0 [shape = 'u32[]', space=smem, size = 0x4, offset = 0x4, fixed_abs, tag = 'smem constant byte address 0x4 - core index']
  #allocation1 [shape = 'u32[72,128]{1,0:T(1,128)}', space=vmem, size = 0x9000, scoped, tag = 'internal scratch']
  #allocation2 [shape = 'bf16[16,1152]{1,0:T(8,128)(2,1)}', space=vmem, size = 0x9000, scoped, tag = 'scratch operand']
  %s0 = inlined_call_operand.vmem [shape: f32[2,16,128], index: 0, kind: input, shape index: {}]
  %s1 = inlined_call_operand.vmem [shape: f32[1,128], index: 1, kind: input, shape index: {}]
  %s2 = inlined_call_operand.vmem [shape: f32[1,128], index: 2, kind: input, shape index: {}]
  %s3 = inlined_call_operand.hbm [shape: f32[128,128], index: 3, kind: input, shape index: {}]
  %s4 = inlined_call_operand.vmem [shape: f32[3,16,1], index: 4, kind: input, shape index: {}]
  %s5 = inlined_call_operand.hbm [shape: bf16[1152,128], index: 5, kind: input, shape index: {}]
  %s6 = inlined_call_operand.vmem [shape: f32[1,128], index: 6, kind: input, shape index: {}]
  %s7 = inlined_call_operand.hbm [shape: f32[2,16,128], index: 7, kind: output, shape index: {}]
  %s8 = sld [smem:[#allocation0]]
  $region69: #{tpu_custom_call.1} parent=0
    _
  %s10 = ssub.s32 1, %s8
  %s11 = scalar_select 0, %s10, %s8
  $region1: #{tpu_custom_call.1} parent=0
    #allocation3 [shape = 'u8[65536]{0}', space=vmem, size = 0x10000, scoped, tag = 'input window, operand 3, single buffered']
    #allocation4 [shape = 's32[2]{0}', space=sflag, size = 0x8, scoped, tag = 'scoped memory for tpu_custom_call.1']
    #allocation5 [shape = 's32[2]{0}', space=sflag, size = 0x8, scoped, tag = 'scoped memory for tpu_custom_call.1']
    #allocation6 [shape = 'u8[294912]{0}', space=vmem, size = 0x48000, scoped, tag = 'input window, operand 5, single buffered']
    #allocation7 [shape = 's32[1]{0}', space=sflag, size = 0x4, scoped, tag = 'scoped memory for tpu_custom_call.1']
    #allocation8 [shape = 'u8[16384]{0}', space=vmem, size = 0x4000, scoped, tag = 'output window, operand 0']
    %12 = vsyncpa [#allocation4], 0
    %13 = vsyncpa [#allocation7], 0
    %14 = vsyncpa [#allocation5], 0
    %s15 = scalar_lea.sflag [#allocation5], 1
    %16 = vsyncpa %s15, 0
    loop: start=0, step=1, limit=4
    $region2: #{tpu_custom_call.1} parent=1 // loop_pre_header
      _
    $region3: #{tpu_custom_call.1} parent=1 // loop_header
      %s18 = sphi 0, %s22
      %p19 = scmp.ge.s32.totalorder %s18, 4
      %s28 = sphi 0, %s30
      %s31 = sphi 0, %s28
      %s32 = sphi 0, %s31
      %s48 = sphi 0, %s32
      %s52 = sphi 0, %s52
      %s54 = sphi 0, %s52
      %s55 = sphi 0, %s54
      %s69 = sphi 0, %s55
      %s73 = sphi 0, %s73
      %s75 = sphi 0, %s73
      %s76 = sphi 0, %s75
      %s90 = sphi 0, %s76
      %s94 = sphi 0, %s94
      %s96 = sphi 0, %s94
      %s97 = sphi 0, %s96
      %s111 = sphi 0, %s97
      %s115 = sphi 0, %s115
      %s117 = sphi 0, %s115
      %s118 = sphi 0, %s117
      %s132 = sphi 0, %s118
      %s136 = sphi 0, %s136
      %s138 = sphi 0, %s136
      %s139 = sphi 0, %s138
      %s153 = sphi 0, %s139
      %s157 = sphi 0, %s157
      %s159 = sphi 0, %s157
      %s160 = sphi 0, %s159
      %s174 = sphi 0, %s160
      %s180 = sphi 0, %s182
      %s183 = sphi 0, %s180
      %s184 = sphi 0, %s183
      %s200 = sphi 0, %s184
    $region4: #{tpu_custom_call.1} parent=1 // loop_header_branch
      %21 = sbr.rel (%p19) target = $region8
    $region5: #{tpu_custom_call.1} parent=1 // loop_body
      %s23 = ssub.s32 %s18, 1
      %s24 = ssub.s32 %s18, 2
      %s25 = sadd.s32 %s18, 1
      %s26 = ssub.s32 %s18, %s25
      %p27 = scmp.eq.s32.totalorder %s26, 0
      %s29 = sadd.s32 %s28, 1
      %s30 = scalar_select %p27, %s28, %s29
      %p33 = pneg %p27
      %p34 = scmp.eq.s32.totalorder %s18, 1
      %p35 = por %p33, %p34
      %p36 = scmp.ne.s32.totalorder %s28, %s31
      %p37 = scmp.eq.s32.totalorder %s18, 0
      %p38 = por %p36, %p37
      %p39 = scmp.ne.s32.totalorder %s28, %s31
      %p40 = scmp.eq.s32.totalorder %s23, 1
      %p41 = por %p39, %p40
      %p42 = scmp.ne.s32.totalorder %s31, %s32
      %p43 = scmp.eq.s32.totalorder %s23, 0
      %p44 = por %p42, %p43
      %p45 = scmp.ne.s32.totalorder %s31, %s32
      %p46 = scmp.eq.s32.totalorder %s24, 1
      %p47 = por %p45, %p46
      %p49 = scmp.ne.s32.totalorder %s32, %s48
      %p50 = scmp.eq.s32.totalorder %s24, 0
      %p51 = por %p49, %p50
      %s53 = sadd.s32 %s52, 1
      %p56 = scmp.eq.s32.totalorder %s18, 1
      %p57 = scmp.ne.s32.totalorder %s52, %s54
      %p58 = scmp.eq.s32.totalorder %s18, 0
      %p59 = por %p57, %p58
      %p60 = scmp.ne.s32.totalorder %s52, %s54
      %p61 = scmp.eq.s32.totalorder %s23, 1
      %p62 = por %p60, %p61
      %p63 = scmp.ne.s32.totalorder %s54, %s55
      %p64 = scmp.eq.s32.totalorder %s23, 0
      %p65 = por %p63, %p64
      %p66 = scmp.ne.s32.totalorder %s54, %s55
      %p67 = scmp.eq.s32.totalorder %s24, 1
      %p68 = por %p66, %p67
      %p70 = scmp.ne.s32.totalorder %s55, %s69
      %p71 = scmp.eq.s32.totalorder %s24, 0
      %p72 = por %p70, %p71
      %s74 = sadd.s32 %s73, 1
      %p77 = scmp.eq.s32.totalorder %s18, 1
      %p78 = scmp.ne.s32.totalorder %s73, %s75
      %p79 = scmp.eq.s32.totalorder %s18, 0
      %p80 = por %p78, %p79
      %p81 = scmp.ne.s32.totalorder %s73, %s75
      %p82 = scmp.eq.s32.totalorder %s23, 1
      %p83 = por %p81, %p82
      %p84 = scmp.ne.s32.totalorder %s75, %s76
      %p85 = scmp.eq.s32.totalorder %s23, 0
      %p86 = por %p84, %p85
      %p87 = scmp.ne.s32.totalorder %s75, %s76
      %p88 = scmp.eq.s32.totalorder %s24, 1
      %p89 = por %p87, %p88
      %p91 = scmp.ne.s32.totalorder %s76, %s90
      %p92 = scmp.eq.s32.totalorder %s24, 0
      %p93 = por %p91, %p92
      %s95 = sadd.s32 %s94, 1
      %p98 = scmp.eq.s32.totalorder %s18, 1
      %p99 = scmp.ne.s32.totalorder %s94, %s96
      %p100 = scmp.eq.s32.totalorder %s18, 0
      %p101 = por %p99, %p100
      %p102 = scmp.ne.s32.totalorder %s94, %s96
      %p103 = scmp.eq.s32.totalorder %s23, 1
      %p104 = por %p102, %p103
      %p105 = scmp.ne.s32.totalorder %s96, %s97
      %p106 = scmp.eq.s32.totalorder %s23, 0
      %p107 = por %p105, %p106
      %p108 = scmp.ne.s32.totalorder %s96, %s97
      %p109 = scmp.eq.s32.totalorder %s24, 1
      %p110 = por %p108, %p109
      %p112 = scmp.ne.s32.totalorder %s97, %s111
      %p113 = scmp.eq.s32.totalorder %s24, 0
      %p114 = por %p112, %p113
      %s116 = sadd.s32 %s115, 1
      %p119 = scmp.eq.s32.totalorder %s18, 1
      %p120 = scmp.ne.s32.totalorder %s115, %s117
      %p121 = scmp.eq.s32.totalorder %s18, 0
      %p122 = por %p120, %p121
      %p123 = scmp.ne.s32.totalorder %s115, %s117
      %p124 = scmp.eq.s32.totalorder %s23, 1
      %p125 = por %p123, %p124
      %p126 = scmp.ne.s32.totalorder %s117, %s118
      %p127 = scmp.eq.s32.totalorder %s23, 0
      %p128 = por %p126, %p127
      %p129 = scmp.ne.s32.totalorder %s117, %s118
      %p130 = scmp.eq.s32.totalorder %s24, 1
      %p131 = por %p129, %p130
      %p133 = scmp.ne.s32.totalorder %s118, %s132
      %p134 = scmp.eq.s32.totalorder %s24, 0
      %p135 = por %p133, %p134
      %s137 = sadd.s32 %s136, 1
      %p140 = scmp.eq.s32.totalorder %s18, 1
      %p141 = scmp.ne.s32.totalorder %s136, %s138
      %p142 = scmp.eq.s32.totalorder %s18, 0
      %p143 = por %p141, %p142
      %p144 = scmp.ne.s32.totalorder %s136, %s138
      %p145 = scmp.eq.s32.totalorder %s23, 1
      %p146 = por %p144, %p145
      %p147 = scmp.ne.s32.totalorder %s138, %s139
      %p148 = scmp.eq.s32.totalorder %s23, 0
      %p149 = por %p147, %p148
      %p150 = scmp.ne.s32.totalorder %s138, %s139
      %p151 = scmp.eq.s32.totalorder %s24, 1
      %p152 = por %p150, %p151
      %p154 = scmp.ne.s32.totalorder %s139, %s153
      %p155 = scmp.eq.s32.totalorder %s24, 0
      %p156 = por %p154, %p155
      %s158 = sadd.s32 %s157, 1
      %p161 = scmp.eq.s32.totalorder %s18, 1
      %p162 = scmp.ne.s32.totalorder %s157, %s159
      %p163 = scmp.eq.s32.totalorder %s18, 0
      %p164 = por %p162, %p163
      %p165 = scmp.ne.s32.totalorder %s157, %s159
      %p166 = scmp.eq.s32.totalorder %s23, 1
      %p167 = por %p165, %p166
      %p168 = scmp.ne.s32.totalorder %s159, %s160
      %p169 = scmp.eq.s32.totalorder %s23, 0
      %p170 = por %p168, %p169
      %p171 = scmp.ne.s32.totalorder %s159, %s160
      %p172 = scmp.eq.s32.totalorder %s24, 1
      %p173 = por %p171, %p172
      %p175 = scmp.ne.s32.totalorder %s160, %s174
      %p176 = scmp.eq.s32.totalorder %s24, 0
      %p177 = por %p175, %p176
      %s178 = ssub.s32 %s18, %s25
      %p179 = scmp.eq.s32.totalorder %s178, 0
      %s181 = sadd.s32 %s180, 1
      %s182 = scalar_select %p179, %s180, %s181
      %p185 = pneg %p179
      %p186 = scmp.eq.s32.totalorder %s18, 1
      %p187 = por %p185, %p186
      %p188 = scmp.ne.s32.totalorder %s180, %s183
      %p189 = scmp.eq.s32.totalorder %s18, 0
      %p190 = por %p188, %p189
      %p191 = scmp.ne.s32.totalorder %s180, %s183
      %p192 = scmp.eq.s32.totalorder %s23, 1
      %p193 = por %p191, %p192
      %p194 = scmp.ne.s32.totalorder %s183, %s184
      %p195 = scmp.eq.s32.totalorder %s23, 0
      %p196 = por %p194, %p195
      %p197 = scmp.ne.s32.totalorder %s183, %s184
      %p198 = scmp.eq.s32.totalorder %s24, 1
      %p199 = por %p197, %p198
      %p201 = scmp.ne.s32.totalorder %s184, %s200
      %p202 = scmp.eq.s32.totalorder %s24, 0
      %p203 = por %p201, %p202
      %p204 = scmp.le.s32.totalorder 1, %s18
      %p205 = scmp.lt.s32.totalorder %s18, 3
      %p206 = pnand %p204, %p205
      %p207 = pneg %p206
      // Predicated region
      $region9: #{tpu_custom_call.1} parent=5 // pred_check
        _
      $region10: #{tpu_custom_call.1} parent=5 // pred_check_branch
        %209 = sbr.rel (%p206) target = $region12
      $region11: #{tpu_custom_call.1} parent=5 // pred_region
        %s210 = ssub.s32 %s18, 1
        // Predicated region
        $region13: #{tpu_custom_call.1} parent=11 // pred_check
          %p211 = pneg %p65
        $region14: #{tpu_custom_call.1} parent=11 // pred_check_branch
          %213 = sbr.rel (%p211) target = $region16
        $region15: #{tpu_custom_call.1} parent=11 // pred_region
          _
        $region16: #{tpu_custom_call.1} parent=11 // pred_fallthru
          _
        // Predicated region
        $region17: #{tpu_custom_call.1} parent=11 // pred_check
          %p214 = pneg %p86
        $region18: #{tpu_custom_call.1} parent=11 // pred_check_branch
          %216 = sbr.rel (%p214) target = $region20
        $region19: #{tpu_custom_call.1} parent=11 // pred_region
          _
        $region20: #{tpu_custom_call.1} parent=11 // pred_fallthru
          _
        // Predicated region
        $region21: #{tpu_custom_call.1} parent=11 // pred_check
          %p217 = pneg %p107
        $region22: #{tpu_custom_call.1} parent=11 // pred_check_branch
          %219 = sbr.rel (%p217) target = $region24
        $region23: #{tpu_custom_call.1} parent=11 // pred_region
          %221 = vsyncadd [#allocation4], 0
          %s222 = sshll.u32 %s3, 4
          %s223 = int_to_ptr.hbm [resolvable:$true] %s222
          %s224 = sshll.u32 [#allocation3], 4
          %s225 = int_to_ptr.vmem [resolvable:$true] %s224
          %230 = dma.hbm_to_vmem [thread:$0]  %s223, 2048, %s225, [#allocation4], 128, 128, 8
        $region24: #{tpu_custom_call.1} parent=11 // pred_fallthru
          _
        // Predicated region
        $region25: #{tpu_custom_call.1} parent=11 // pred_check
          %p231 = pneg %p128
        $region26: #{tpu_custom_call.1} parent=11 // pred_check_branch
          %233 = sbr.rel (%p231) target = $region28
        $region27: #{tpu_custom_call.1} parent=11 // pred_region
          _
        $region28: #{tpu_custom_call.1} parent=11 // pred_fallthru
          _
        // Predicated region
        $region29: #{tpu_custom_call.1} parent=11 // pred_check
          %p234 = pneg %p149
        $region30: #{tpu_custom_call.1} parent=11 // pred_check_branch
          %236 = sbr.rel (%p234) target = $region32
        $region31: #{tpu_custom_call.1} parent=11 // pred_region
          %238 = vsyncadd [#allocation7], 0
          %s239 = sshll.u32 %s5, 4
          %s240 = int_to_ptr.hbm [resolvable:$true] %s239
          %s241 = sshll.u32 [#allocation6], 4
          %s242 = int_to_ptr.vmem [resolvable:$true] %s241
          %247 = dma.hbm_to_vmem [thread:$0]  %s240, 9216, %s242, [#allocation7], 64, 64, 4
        $region32: #{tpu_custom_call.1} parent=11 // pred_fallthru
          _
        // Predicated region
        $region33: #{tpu_custom_call.1} parent=11 // pred_check
          %p248 = pneg %p170
        $region34: #{tpu_custom_call.1} parent=11 // pred_check_branch
          %250 = sbr.rel (%p248) target = $region36
        $region35: #{tpu_custom_call.1} parent=11 // pred_region
          _
        $region36: #{tpu_custom_call.1} parent=11 // pred_fallthru
          _
      $region12: #{tpu_custom_call.1} parent=5 // pred_fallthru
        _
      %p251 = scmp.lt.s32.totalorder %s18, 2
      // Predicated region
      $region37: #{tpu_custom_call.1} parent=5 // pred_check
        %p252 = pneg %p251
      $region38: #{tpu_custom_call.1} parent=5 // pred_check_branch
        %254 = sbr.rel (%p252) target = $region40
      $region39: #{tpu_custom_call.1} parent=5 // pred_region
        // Predicated region
        $region41: #{tpu_custom_call.1} parent=39 // pred_check
          %p255 = pneg %p38
        $region42: #{tpu_custom_call.1} parent=39 // pred_check_branch
          %257 = sbr.rel (%p255) target = $region44
        $region43: #{tpu_custom_call.1} parent=39 // pred_region
          %p258 = scmp.lt.s32.totalorder %s18, 1
          %s259 = scalar_select %p258, %s18, 1
          %s260 = smul.addr %s259, 2
          %s261 = smul.addr %s260, 8
          %s262 = scalar_lea.vmem %s0, %s261
        $region44: #{tpu_custom_call.1} parent=39 // pred_fallthru
          _
      $region40: #{tpu_custom_call.1} parent=5 // pred_fallthru
        _
      %p263 = scmp.le.s32.totalorder 1, %s18
      %p264 = scmp.lt.s32.totalorder %s18, 3
      %p265 = pnand %p263, %p264
      %p266 = pneg %p265
      // Predicated region
      $region45: #{tpu_custom_call.1} parent=5 // pred_check
        _
      $region46: #{tpu_custom_call.1} parent=5 // pred_check_branch
        %268 = sbr.rel (%p265) target = $region48
      $region47: #{tpu_custom_call.1} parent=5 // pred_region
        %s269 = ssub.s32 %s18, 1
        // Predicated region
        $region49: #{tpu_custom_call.1} parent=47 // pred_check
          %p270 = pneg %p107
        $region50: #{tpu_custom_call.1} parent=47 // pred_check_branch
          %272 = sbr.rel (%p270) target = $region52
        $region51: #{tpu_custom_call.1} parent=47 // pred_region
          %274 = dma.done [#allocation4], 2048
        $region52: #{tpu_custom_call.1} parent=47 // pred_fallthru
          _
        // Predicated region
        $region53: #{tpu_custom_call.1} parent=47 // pred_check
          %p275 = pneg %p149
        $region54: #{tpu_custom_call.1} parent=47 // pred_check_branch
          %277 = sbr.rel (%p275) target = $region56
        $region55: #{tpu_custom_call.1} parent=47 // pred_region
          %279 = dma.done [#allocation7], 9216
        $region56: #{tpu_custom_call.1} parent=47 // pred_fallthru
          _
        %p280 = scmp.lt.s32.totalorder %s23, 1
        %s281 = scalar_select %p280, %s23, 1
        %s282 = smul.addr %s281, 2
        %s283 = smul.addr %s282, 8
        %s284 = scalar_lea.vmem %s0, %s283
        %p285 = pneg %p44
        %p286 = pneg %p41
        %p287 = pneg %p65
        %p288 = pneg %p62
        %p289 = pneg %p86
        %p290 = pneg %p83
        %p291 = pneg %p107
        %p292 = pneg %p104
        %p293 = pneg %p128
        %p294 = pneg %p125
        %p295 = pneg %p149
        %p296 = pneg %p146
        %p297 = pneg %p170
        %p298 = pneg %p167
        %p299 = pneg %p196
        %p300 = pneg %p193
        %s301 = sand.u32 %s183, 1
        %s302 = scalar_lea.sflag [#allocation5], %s301
        %s303 = sand.u32 %s183, 1
        %s304 = smul.addr %s303, 16
        %s305 = scalar_lea.vmem [#allocation8], %s304
        %p306 = scmp.lt.s32.totalorder %s23, 1
        %s307 = scalar_select %p306, %s23, 1
        %s308 = smul.addr %s307, 2
        %s309 = smul.addr %s308, 8
        %s310 = scalar_lea.vmem %s0, %s309
        %v311 = vld [vmem:[%s310] sm:$0xff]
        %v312 = vld [vmem:[%s310 + $0x8] sm:$0xff]
        %v313 = vadd.f32 %v311, %v312
        %v314 = vrot.slane %v313, 4
        %v315 = vadd.f32 %v313, %v314
        %v316 = vrot.slane %v315, 2
        %v317 = vadd.f32 %v315, %v316
        %v318 = vrot.slane %v317, 1
        %v319 = vadd.f32 %v317, %v318
        %v320 = vmul.f32 %v311, %v311
        %v321 = vmul.f32 %v312, %v312
        %v322 = vadd.f32 %v320, %v321
        %v323 = vrot.slane %v322, 4
        %v324 = vadd.f32 %v322, %v323
        %v325 = vrot.slane %v324, 2
        %v326 = vadd.f32 %v324, %v325
        %v327 = vrot.slane %v326, 1
        %v328 = vadd.f32 %v326, %v327
        %v329 = vld [vmem:[#allocation3] sm:$0xff]
        %v330 = vld [vmem:[#allocation3 + $0x8] sm:$0xff]
        %v331 = vld [vmem:[#allocation3 + $0x10] sm:$0xff]
        %v332 = vld [vmem:[#allocation3 + $0x18] sm:$0xff]
        %v333 = vld [vmem:[#allocation3 + $0x20] sm:$0xff]
        %v334 = vld [vmem:[#allocation3 + $0x28] sm:$0xff]
        %v335 = vld [vmem:[#allocation3 + $0x30] sm:$0xff]
        %v336 = vld [vmem:[#allocation3 + $0x38] sm:$0xff]
        %v337 = vld [vmem:[#allocation3 + $0x40] sm:$0xff]
        %v338 = vld [vmem:[#allocation3 + $0x48] sm:$0xff]
        %v339 = vld [vmem:[#allocation3 + $0x50] sm:$0xff]
        %v340 = vld [vmem:[#allocation3 + $0x58] sm:$0xff]
        %v341 = vld [vmem:[#allocation3 + $0x60] sm:$0xff]
        %v342 = vld [vmem:[#allocation3 + $0x68] sm:$0xff]
        %v343 = vld [vmem:[#allocation3 + $0x70] sm:$0xff]
        %v344 = vld [vmem:[#allocation3 + $0x78] sm:$0xff]
        %345 = vmatpush.msra.mxu0 %v344
        %346 = vmatpush.msra.mxu0 %v343
        %347 = vmatpush.msra.mxu0 %v342
        %348 = vmatpush.msra.mxu0 %v341
        %349 = vmatpush.msra.mxu0 %v340
        %350 = vmatpush.msra.mxu0 %v339
        %351 = vmatpush.msra.mxu0 %v338
        %352 = vmatpush.msra.mxu0 %v337
        %353 = vmatpush.msra.mxu0 %v336
        %354 = vmatpush.msra.mxu0 %v335
        %355 = vmatpush.msra.mxu0 %v334
        %356 = vmatpush.msra.mxu0 %v333
        %357 = vmatpush.msra.mxu0 %v332
        %358 = vmatpush.msra.mxu0 %v331
        %359 = vmatpush.msra.mxu0 %v330
        %360 = vmatpush.msra.mxu0 %v329
        %361 = vmatmul.f32.gmra.mxu0 %v319
        %v362 = vpop.f32.mrf.mxu0
        %v363 = vadd.f32 0.0, %v362
        %364 = vdwg.mxu0
        %365 = vmatpush.msra.mxu0 %v344
        %366 = vmatpush.msra.mxu0 %v343
        %367 = vmatpush.msra.mxu0 %v342
        %368 = vmatpush.msra.mxu0 %v341
        %369 = vmatpush.msra.mxu0 %v340
        %370 = vmatpush.msra.mxu0 %v339
        %371 = vmatpush.msra.mxu0 %v338
        %372 = vmatpush.msra.mxu0 %v337
        %373 = vmatpush.msra.mxu0 %v336
        %374 = vmatpush.msra.mxu0 %v335
        %375 = vmatpush.msra.mxu0 %v334
        %376 = vmatpush.msra.mxu0 %v333
        %377 = vmatpush.msra.mxu0 %v332
        %378 = vmatpush.msra.mxu0 %v331
        %379 = vmatpush.msra.mxu0 %v330
        %380 = vmatpush.msra.mxu0 %v329
        %381 = vmatmul.f32.gmra.mxu0 %v328
        %v382 = vpop.f32.mrf.mxu0
        %v383 = vadd.f32 0.0, %v382
        %384 = vdwg.mxu0
        %v385 = vmul.f32 %v363, %v363
        %v386 = vsub.f32 %v383, %v385
        %v387 = vadd.f32 %v386, 1e-05
        %v388 = vrsqrt.pop %v387
        %v389 = vmul.f32 %v388, %v387
        %v390 = vmul.f32 %v389, %v388
        %v391 = vmul.f32 0.5, %v390
        %v392 = vsub.f32 1.5, %v391
        %v393 = vmul.f32 %v388, %v392
        %vm394 = vweird.f32 %v387
        %vm395 = vweird.f32 %v388
        %vm396 = vmor %vm394, %vm395
        %v397 = vsel %vm396, %v388, %v393
        %v398 = vld [vmem:[%s1] sm:$0x1]
        %v399 = vmul.f32 %v398, %v397
        %v400 = vld [vmem:[%s2] sm:$0x1]
        %v401 = vmul.f32 %v363, %v399
        %v402 = vsub.f32 %v400, %v401
        %v404 = vperm.slane %v399, 0
        %v406 = vmul.f32 %v311, %v404
        %v407 = vmul.f32 %v312, %v404
        %v409 = vperm.slane %v402, 0
        %v411 = vadd.f32 %v406, %v409
        %v412 = vadd.f32 %v407, %v409
        %v413 = vxor.u32 %v411, 2147483648
        %v414 = vxor.u32 %v412, 2147483648
        %v415 = vmul.f32 %v413, 1.442695
        %v416 = vpow.pop %v415
        %v417 = vmul.f32 %v414, 1.442695
        %v418 = vpow.pop %v417
        %v419 = vadd.f32 %v416, 1.0
        %v420 = vadd.f32 %v418, 1.0
        %v421 = vrcp.pop %v419
        %v422 = vmul.f32 %v419, %v421
        %v423 = vsub.f32 1.0, %v422
        %v424 = vmul.f32 %v421, %v423
        %v425 = vadd.f32 %v421, %v424
        %vm426 = vweird.f32 %v419
        %vm427 = vweird.f32 %v421
        %vm428 = vmor %vm426, %vm427
        %v429 = vsel %vm428, %v421, %v425
        %v430 = vand.u32 2147483647, %v419
        %vm431 = vcmp.eq.f32.partialorder %v430, 8.507059e+37
        %v432 = vand.u32 %v419, 2147483648
        %v433 = vor.u32 1.1754944e-38, %v432
        %v434 = vsel %vm431, %v433, %v429
        %v435 = vmul.f32 1.0, %v434
        %v436 = vrcp.pop %v420
        %v437 = vmul.f32 %v420, %v436
        %v438 = vsub.f32 1.0, %v437
        %v439 = vmul.f32 %v436, %v438
        %v440 = vadd.f32 %v436, %v439
        %vm441 = vweird.f32 %v420
        %vm442 = vweird.f32 %v436
        %vm443 = vmor %vm441, %vm442
        %v444 = vsel %vm443, %v436, %v440
        %v445 = vand.u32 2147483647, %v420
        %vm446 = vcmp.eq.f32.partialorder %v445, 8.507059e+37
        %v447 = vand.u32 %v420, 2147483648
        %v448 = vor.u32 1.1754944e-38, %v447
        %v449 = vsel %vm446, %v448, %v444
        %v450 = vmul.f32 1.0, %v449
        %v451 = vmul.f32 %v411, %v435
        %v452 = vmul.f32 %v412, %v450
        %v453 = vrot.slane %v451, 7
        %v454 = vrot.slane %v452, 7
        %v455 = vlaneseq
        %v456 = vshrl.u32 %v455, 7
        %vm457 = vcmp.lt.s32.totalorder %v456, 1
        %v458 = vsel %vm457, %v453, %v454
        %v459 = vsel %vm457, %v454, %v453
        %v460 = vld [vmem:[%s4] sm:$0xff]
        %v461 = vld [vmem:[%s4 + $0x8] sm:$0xff]
        %463 = vset.pattern.permute.xlu0 0
        %464 = vperm.xlu0 %463, %v460
        %v465 = vpop.permute.xlu0 %464
        %468 = vset.pattern.permute.xlu0 0
        %469 = vperm.xlu0 %468, %v461
        %v470 = vpop.permute.xlu0 %469
        %v472 = vmul.f32 %v459, %v465
        %v473 = vmul.f32 %v458, %v470
        %474 = vrot.lane.b32.xlu0 %v472, 8
        %v475 = vpop.permute.xlu0 %474
        %476 = vrot.lane.b32.xlu0 %v473, 8
        %v477 = vpop.permute.xlu0 %476
        %v478 = vpack.c.bf16 %v475, %v475
        %v479 = vpack.c.bf16 %v477, %v477
        %480 = vst [vmem:[#allocation2] sm:$0xf] %v478
        %481 = vst [vmem:[#allocation2 + $0x24] sm:$0xf] %v479
        %v482 = vpack.c.bf16 %v472, %v472
        %v483 = vpack.c.bf16 %v473, %v473
        %484 = vst [vmem:[#allocation2 + $0x4] sm:$0xf] %v482
        %485 = vst [vmem:[#allocation2 + $0x28] sm:$0xf] %v483
        %486 = vrot.lane.b32.xlu0 %v472, 120
        %v487 = vpop.permute.xlu0 %486
        %488 = vrot.lane.b32.xlu0 %v473, 120
        %v489 = vpop.permute.xlu0 %488
        %v490 = vpack.c.bf16 %v487, %v487
        %v491 = vpack.c.bf16 %v489, %v489
        %492 = vst [vmem:[#allocation2 + $0x8] sm:$0xf] %v490
        %493 = vst [vmem:[#allocation2 + $0x2c] sm:$0xf] %v491
        %494 = vrot.lane.b32.xlu0 %v451, 8
        %v495 = vpop.permute.xlu0 %494
        %496 = vrot.lane.b32.xlu0 %v452, 8
        %v497 = vpop.permute.xlu0 %496
        %v498 = vpack.c.bf16 %v495, %v495
        %v499 = vpack.c.bf16 %v497, %v497
        %500 = vst [vmem:[#allocation2 + $0xc] sm:$0xf] %v498
        %501 = vst [vmem:[#allocation2 + $0x30] sm:$0xf] %v499
        %v502 = vpack.c.bf16 %v451, %v451
        %v503 = vpack.c.bf16 %v452, %v452
        %504 = vst [vmem:[#allocation2 + $0x10] sm:$0xf] %v502
        %505 = vst [vmem:[#allocation2 + $0x34] sm:$0xf] %v503
        %506 = vrot.lane.b32.xlu0 %v451, 120
        %v507 = vpop.permute.xlu0 %506
        %508 = vrot.lane.b32.xlu0 %v452, 120
        %v509 = vpop.permute.xlu0 %508
        %v510 = vpack.c.bf16 %v507, %v507
        %v511 = vpack.c.bf16 %v509, %v509
        %512 = vst [vmem:[#allocation2 + $0x14] sm:$0xf] %v510
        %513 = vst [vmem:[#allocation2 + $0x38] sm:$0xf] %v511
        %v514 = vrot.slane %v451, 1
        %v515 = vrot.slane %v452, 1
        %vm516 = vcmp.lt.s32.totalorder %v456, 7
        %v517 = vsel %vm516, %v514, %v515
        %v518 = vsel %vm516, %v515, %v514
        %s519 = scalar_lea.vmem %s4, 32
        %v520 = vld [vmem:[%s519] sm:$0xff]
        %v521 = vld [vmem:[%s519 + $0x8] sm:$0xff]
        %523 = vset.pattern.permute.xlu0 0
        %524 = vperm.xlu0 %523, %v520
        %v525 = vpop.permute.xlu0 %524
        %528 = vset.pattern.permute.xlu0 0
        %529 = vperm.xlu0 %528, %v521
        %v530 = vpop.permute.xlu0 %529
        %v532 = vmul.f32 %v517, %v525
        %v533 = vmul.f32 %v518, %v530
        %534 = vrot.lane.b32.xlu0 %v532, 8
        %v535 = vpop.permute.xlu0 %534
        %536 = vrot.lane.b32.xlu0 %v533, 8
        %v537 = vpop.permute.xlu0 %536
        %v538 = vpack.c.bf16 %v535, %v535
        %v539 = vpack.c.bf16 %v537, %v537
        %540 = vst [vmem:[#allocation2 + $0x18] sm:$0xf] %v538
        %541 = vst [vmem:[#allocation2 + $0x3c] sm:$0xf] %v539
        %v542 = vpack.c.bf16 %v532, %v532
        %v543 = vpack.c.bf16 %v533, %v533
        %544 = vst [vmem:[#allocation2 + $0x1c] sm:$0xf] %v542
        %545 = vst [vmem:[#allocation2 + $0x40] sm:$0xf] %v543
        %546 = vrot.lane.b32.xlu0 %v532, 120
        %v547 = vpop.permute.xlu0 %546
        %548 = vrot.lane.b32.xlu0 %v533, 120
        %v549 = vpop.permute.xlu0 %548
        %v550 = vpack.c.bf16 %v547, %v547
        %v551 = vpack.c.bf16 %v549, %v549
        %552 = vst [vmem:[#allocation2 + $0x20] sm:$0xf] %v550
        %553 = vst [vmem:[#allocation2 + $0x44] sm:$0xf] %v551
        %v554 = vld [vmem:[#allocation2] sm:$0xff]
        %v555 = vld [vmem:[#allocation2 + $0x8] sm:$0xff]
        %v556 = vld [vmem:[#allocation2 + $0x10] sm:$0xff]
        %v557 = vld [vmem:[#allocation2 + $0x18] sm:$0xff]
        %v558 = vld [vmem:[#allocation2 + $0x20] sm:$0xf]
        %v559 = vld [vmem:[#allocation2 + $0x24] sm:$0xff]
        %v560 = vld [vmem:[#allocation2 + $0x2c] sm:$0xff]
        %v561 = vld [vmem:[#allocation2 + $0x34] sm:$0xff]
        %v562 = vld [vmem:[#allocation2 + $0x3c] sm:$0xff]
        %v563 = vld [vmem:[#allocation2 + $0x44] sm:$0xf]
        %v564 = vld [vmem:[#allocation6] sm:$0xf]
        %v565 = vld [vmem:[#allocation6 + $0x4] sm:$0xf]
        %v566 = vld [vmem:[#allocation6 + $0x8] sm:$0xf]
        %v567 = vld [vmem:[#allocation6 + $0xc] sm:$0xf]
        %v568 = vld [vmem:[#allocation6 + $0x10] sm:$0xf]
        %v569 = vld [vmem:[#allocation6 + $0x14] sm:$0xf]
        %v570 = vld [vmem:[#allocation6 + $0x18] sm:$0xf]
        %v571 = vld [vmem:[#allocation6 + $0x1c] sm:$0xf]
        %v572 = vld [vmem:[#allocation6 + $0x20] sm:$0xf]
        %v573 = vld [vmem:[#allocation6 + $0x24] sm:$0xf]
        %v574 = vld [vmem:[#allocation6 + $0x28] sm:$0xf]
        %v575 = vld [vmem:[#allocation6 + $0x2c] sm:$0xf]
        %v576 = vld [vmem:[#allocation6 + $0x30] sm:$0xf]
        %v577 = vld [vmem:[#allocation6 + $0x34] sm:$0xf]
        %v578 = vld [vmem:[#allocation6 + $0x38] sm:$0xf]
        %v579 = vld [vmem:[#allocation6 + $0x3c] sm:$0xf]
        %v580 = vld [vmem:[#allocation6 + $0x40] sm:$0xf]
        %v581 = vld [vmem:[#allocation6 + $0x44] sm:$0xf]
        %v582 = vld [vmem:[#allocation6 + $0x48] sm:$0xf]
        %v583 = vld [vmem:[#allocation6 + $0x4c] sm:$0xf]
        %v584 = vld [vmem:[#allocation6 + $0x50] sm:$0xf]
        %v585 = vld [vmem:[#allocation6 + $0x54] sm:$0xf]
        %v586 = vld [vmem:[#allocation6 + $0x58] sm:$0xf]
        %v587 = vld [vmem:[#allocation6 + $0x5c] sm:$0xf]
        %v588 = vld [vmem:[#allocation6 + $0x60] sm:$0xf]
        %v589 = vld [vmem:[#allocation6 + $0x64] sm:$0xf]
        %v590 = vld [vmem:[#allocation6 + $0x68] sm:$0xf]
        %v591 = vld [vmem:[#allocation6 + $0x6c] sm:$0xf]
        %v592 = vld [vmem:[#allocation6 + $0x70] sm:$0xf]
        %v593 = vld [vmem:[#allocation6 + $0x74] sm:$0xf]
        %v594 = vld [vmem:[#allocation6 + $0x78] sm:$0xf]
        %v595 = vld [vmem:[#allocation6 + $0x7c] sm:$0xf]
        %v596 = vld [vmem:[#allocation6 + $0x80] sm:$0xf]
        %v597 = vld [vmem:[#allocation6 + $0x84] sm:$0xf]
        %v598 = vld [vmem:[#allocation6 + $0x88] sm:$0xf]
        %v599 = vld [vmem:[#allocation6 + $0x8c] sm:$0xf]
        %v600 = vld [vmem:[#allocation6 + $0x90] sm:$0xf]
        %v601 = vld [vmem:[#allocation6 + $0x94] sm:$0xf]
        %v602 = vld [vmem:[#allocation6 + $0x98] sm:$0xf]
        %v603 = vld [vmem:[#allocation6 + $0x9c] sm:$0xf]
        %v604 = vld [vmem:[#allocation6 + $0xa0] sm:$0xf]
        %v605 = vld [vmem:[#allocation6 + $0xa4] sm:$0xf]
        %v606 = vld [vmem:[#allocation6 + $0xa8] sm:$0xf]
        %v607 = vld [vmem:[#allocation6 + $0xac] sm:$0xf]
        %v608 = vld [vmem:[#allocation6 + $0xb0] sm:$0xf]
        %v609 = vld [vmem:[#allocation6 + $0xb4] sm:$0xf]
        %v610 = vld [vmem:[#allocation6 + $0xb8] sm:$0xf]
        %v611 = vld [vmem:[#allocation6 + $0xbc] sm:$0xf]
        %v612 = vld [vmem:[#allocation6 + $0xc0] sm:$0xf]
        %v613 = vld [vmem:[#allocation6 + $0xc4] sm:$0xf]
        %v614 = vld [vmem:[#allocation6 + $0xc8] sm:$0xf]
        %v615 = vld [vmem:[#allocation6 + $0xcc] sm:$0xf]
        %v616 = vld [vmem:[#allocation6 + $0xd0] sm:$0xf]
        %v617 = vld [vmem:[#allocation6 + $0xd4] sm:$0xf]
        %v618 = vld [vmem:[#allocation6 + $0xd8] sm:$0xf]
        %v619 = vld [vmem:[#allocation6 + $0xdc] sm:$0xf]
        %v620 = vld [vmem:[#allocation6 + $0xe0] sm:$0xf]
        %v621 = vld [vmem:[#allocation6 + $0xe4] sm:$0xf]
        %v622 = vld [vmem:[#allocation6 + $0xe8] sm:$0xf]
        %v623 = vld [vmem:[#allocation6 + $0xec] sm:$0xf]
        %v624 = vld [vmem:[#allocation6 + $0xf0] sm:$0xf]
        %v625 = vld [vmem:[#allocation6 + $0xf4] sm:$0xf]
        %v626 = vld [vmem:[#allocation6 + $0xf8] sm:$0xf]
        %v627 = vld [vmem:[#allocation6 + $0xfc] sm:$0xf]
        %v628 = vld [vmem:[#allocation6 + $0x100] sm:$0xf]
        %v629 = vld [vmem:[#allocation6 + $0x104] sm:$0xf]
        %v630 = vld [vmem:[#allocation6 + $0x108] sm:$0xf]
        %v631 = vld [vmem:[#allocation6 + $0x10c] sm:$0xf]
        %v632 = vld [vmem:[#allocation6 + $0x110] sm:$0xf]
        %v633 = vld [vmem:[#allocation6 + $0x114] sm:$0xf]
        %v634 = vld [vmem:[#allocation6 + $0x118] sm:$0xf]
        %v635 = vld [vmem:[#allocation6 + $0x11c] sm:$0xf]
        %v636 = vld [vmem:[#allocation6 + $0x120] sm:$0xf]
        %v637 = vld [vmem:[#allocation6 + $0x124] sm:$0xf]
        %v638 = vld [vmem:[#allocation6 + $0x128] sm:$0xf]
        %v639 = vld [vmem:[#allocation6 + $0x12c] sm:$0xf]
        %v640 = vld [vmem:[#allocation6 + $0x130] sm:$0xf]
        %v641 = vld [vmem:[#allocation6 + $0x134] sm:$0xf]
        %v642 = vld [vmem:[#allocation6 + $0x138] sm:$0xf]
        %v643 = vld [vmem:[#allocation6 + $0x13c] sm:$0xf]
        %v644 = vld [vmem:[#allocation6 + $0x140] sm:$0xf]
        %v645 = vld [vmem:[#allocation6 + $0x144] sm:$0xf]
        %v646 = vld [vmem:[#allocation6 + $0x148] sm:$0xf]
        %v647 = vld [vmem:[#allocation6 + $0x14c] sm:$0xf]
        %v648 = vld [vmem:[#allocation6 + $0x150] sm:$0xf]
        %v649 = vld [vmem:[#allocation6 + $0x154] sm:$0xf]
        %v650 = vld [vmem:[#allocation6 + $0x158] sm:$0xf]
        %v651 = vld [vmem:[#allocation6 + $0x15c] sm:$0xf]
        %v652 = vld [vmem:[#allocation6 + $0x160] sm:$0xf]
        %v653 = vld [vmem:[#allocation6 + $0x164] sm:$0xf]
        %v654 = vld [vmem:[#allocation6 + $0x168] sm:$0xf]
        %v655 = vld [vmem:[#allocation6 + $0x16c] sm:$0xf]
        %v656 = vld [vmem:[#allocation6 + $0x170] sm:$0xf]
        %v657 = vld [vmem:[#allocation6 + $0x174] sm:$0xf]
        %v658 = vld [vmem:[#allocation6 + $0x178] sm:$0xf]
        %v659 = vld [vmem:[#allocation6 + $0x17c] sm:$0xf]
        %v660 = vld [vmem:[#allocation6 + $0x180] sm:$0xf]
        %v661 = vld [vmem:[#allocation6 + $0x184] sm:$0xf]
        %v662 = vld [vmem:[#allocation6 + $0x188] sm:$0xf]
        %v663 = vld [vmem:[#allocation6 + $0x18c] sm:$0xf]
        %v664 = vld [vmem:[#allocation6 + $0x190] sm:$0xf]
        %v665 = vld [vmem:[#allocation6 + $0x194] sm:$0xf]
        %v666 = vld [vmem:[#allocation6 + $0x198] sm:$0xf]
        %v667 = vld [vmem:[#allocation6 + $0x19c] sm:$0xf]
        %v668 = vld [vmem:[#allocation6 + $0x1a0] sm:$0xf]
        %v669 = vld [vmem:[#allocation6 + $0x1a4] sm:$0xf]
        %v670 = vld [vmem:[#allocation6 + $0x1a8] sm:$0xf]
        %v671 = vld [vmem:[#allocation6 + $0x1ac] sm:$0xf]
        %v672 = vld [vmem:[#allocation6 + $0x1b0] sm:$0xf]
        %v673 = vld [vmem:[#allocation6 + $0x1b4] sm:$0xf]
        %v674 = vld [vmem:[#allocation6 + $0x1b8] sm:$0xf]
        %v675 = vld [vmem:[#allocation6 + $0x1bc] sm:$0xf]
        %v676 = vld [vmem:[#allocation6 + $0x1c0] sm:$0xf]
        %v677 = vld [vmem:[#allocation6 + $0x1c4] sm:$0xf]
        %v678 = vld [vmem:[#allocation6 + $0x1c8] sm:$0xf]
        %v679 = vld [vmem:[#allocation6 + $0x1cc] sm:$0xf]
        %v680 = vld [vmem:[#allocation6 + $0x1d0] sm:$0xf]
        %v681 = vld [vmem:[#allocation6 + $0x1d4] sm:$0xf]
        %v682 = vld [vmem:[#allocation6 + $0x1d8] sm:$0xf]
        %v683 = vld [vmem:[#allocation6 + $0x1dc] sm:$0xf]
        %v684 = vld [vmem:[#allocation6 + $0x1e0] sm:$0xf]
        %v685 = vld [vmem:[#allocation6 + $0x1e4] sm:$0xf]
        %v686 = vld [vmem:[#allocation6 + $0x1e8] sm:$0xf]
        %v687 = vld [vmem:[#allocation6 + $0x1ec] sm:$0xf]
        %v688 = vld [vmem:[#allocation6 + $0x1f0] sm:$0xf]
        %v689 = vld [vmem:[#allocation6 + $0x1f4] sm:$0xf]
        %v690 = vld [vmem:[#allocation6 + $0x1f8] sm:$0xf]
        %v691 = vld [vmem:[#allocation6 + $0x1fc] sm:$0xf]
        %v692 = vld [vmem:[#allocation6 + $0x200] sm:$0xf]
        %v693 = vld [vmem:[#allocation6 + $0x204] sm:$0xf]
        %v694 = vld [vmem:[#allocation6 + $0x208] sm:$0xf]
        %v695 = vld [vmem:[#allocation6 + $0x20c] sm:$0xf]
        %v696 = vld [vmem:[#allocation6 + $0x210] sm:$0xf]
        %v697 = vld [vmem:[#allocation6 + $0x214] sm:$0xf]
        %v698 = vld [vmem:[#allocation6 + $0x218] sm:$0xf]
        %v699 = vld [vmem:[#allocation6 + $0x21c] sm:$0xf]
        %v700 = vld [vmem:[#allocation6 + $0x220] sm:$0xf]
        %v701 = vld [vmem:[#allocation6 + $0x224] sm:$0xf]
        %v702 = vld [vmem:[#allocation6 + $0x228] sm:$0xf]
        %v703 = vld [vmem:[#allocation6 + $0x22c] sm:$0xf]
        %v704 = vld [vmem:[#allocation6 + $0x230] sm:$0xf]
        %v705 = vld [vmem:[#allocation6 + $0x234] sm:$0xf]
        %v706 = vld [vmem:[#allocation6 + $0x238] sm:$0xf]
        %v707 = vld [vmem:[#allocation6 + $0x23c] sm:$0xf]
        %v708 = vld [vmem:[%s6] sm:$0x1]
        %v710 = vperm.slane %v708, 0
        %v722 = vunpack.c.l.b16 %v554
        %v723 = vunpack.c.h.b16 %v554
        %v724 = vunpack.c.l.b16 %v555
        %v725 = vunpack.c.h.b16 %v555
        %v726 = vunpack.c.l.b16 %v556
        %v727 = vunpack.c.h.b16 %v556
        %v728 = vunpack.c.l.b16 %v557
        %v729 = vunpack.c.h.b16 %v557
        %v730 = vunpack.c.l.b16 %v558
        %v731 = vunpack.c.l.b16 %v559
        %v732 = vunpack.c.h.b16 %v559
        %v733 = vunpack.c.l.b16 %v560
        %v734 = vunpack.c.h.b16 %v560
        %v735 = vunpack.c.l.b16 %v561
        %v736 = vunpack.c.h.b16 %v561
        %v737 = vunpack.c.l.b16 %v562
        %v738 = vunpack.c.h.b16 %v562
        %v739 = vunpack.c.l.b16 %v563
        %v740 = vpack.c.b16 %v731, %v722
        %v741 = vpack.c.b16 %v732, %v723
        %v742 = vpack.c.b16 %v733, %v724
        %v743 = vpack.c.b16 %v734, %v725
        %v744 = vpack.c.b16 %v735, %v726
        %v745 = vpack.c.b16 %v736, %v727
        %v746 = vpack.c.b16 %v737, %v728
        %v747 = vpack.c.b16 %v738, %v729
        %v748 = vpack.c.b16 %v739, %v730
        %v902 = vunpack.c.l.b16 %v564
        %v903 = vunpack.c.l.b16 %v565
        %v904 = vunpack.c.l.b16 %v566
        %v905 = vunpack.c.l.b16 %v567
        %v906 = vunpack.c.l.b16 %v568
        %v907 = vunpack.c.l.b16 %v569
        %v908 = vunpack.c.l.b16 %v570
        %v909 = vunpack.c.l.b16 %v571
        %v910 = vunpack.c.l.b16 %v572
        %v911 = vunpack.c.l.b16 %v573
        %v912 = vunpack.c.l.b16 %v574
        %v913 = vunpack.c.l.b16 %v575
        %v914 = vunpack.c.l.b16 %v576
        %v915 = vunpack.c.l.b16 %v577
        %v916 = vunpack.c.l.b16 %v578
        %v917 = vunpack.c.l.b16 %v579
        %v918 = vunpack.c.l.b16 %v580
        %v919 = vunpack.c.l.b16 %v581
        %v920 = vunpack.c.l.b16 %v582
        %v921 = vunpack.c.l.b16 %v583
        %v922 = vunpack.c.l.b16 %v584
        %v923 = vunpack.c.l.b16 %v585
        %v924 = vunpack.c.l.b16 %v586
        %v925 = vunpack.c.l.b16 %v587
        %v926 = vunpack.c.l.b16 %v588
        %v927 = vunpack.c.l.b16 %v589
        %v928 = vunpack.c.l.b16 %v590
        %v929 = vunpack.c.l.b16 %v591
        %v930 = vunpack.c.l.b16 %v592
        %v931 = vunpack.c.l.b16 %v593
        %v932 = vunpack.c.l.b16 %v594
        %v933 = vunpack.c.l.b16 %v595
        %v934 = vunpack.c.l.b16 %v596
        %v935 = vunpack.c.l.b16 %v597
        %v936 = vunpack.c.l.b16 %v598
        %v937 = vunpack.c.l.b16 %v599
        %v938 = vunpack.c.l.b16 %v600
        %v939 = vunpack.c.l.b16 %v601
        %v940 = vunpack.c.l.b16 %v602
        %v941 = vunpack.c.l.b16 %v603
        %v942 = vunpack.c.l.b16 %v604
        %v943 = vunpack.c.l.b16 %v605
        %v944 = vunpack.c.l.b16 %v606
        %v945 = vunpack.c.l.b16 %v607
        %v946 = vunpack.c.l.b16 %v608
        %v947 = vunpack.c.l.b16 %v609
        %v948 = vunpack.c.l.b16 %v610
        %v949 = vunpack.c.l.b16 %v611
        %v950 = vunpack.c.l.b16 %v612
        %v951 = vunpack.c.l.b16 %v613
        %v952 = vunpack.c.l.b16 %v614
        %v953 = vunpack.c.l.b16 %v615
        %v954 = vunpack.c.l.b16 %v616
        %v955 = vunpack.c.l.b16 %v617
        %v956 = vunpack.c.l.b16 %v618
        %v957 = vunpack.c.l.b16 %v619
        %v958 = vunpack.c.l.b16 %v620
        %v959 = vunpack.c.l.b16 %v621
        %v960 = vunpack.c.l.b16 %v622
        %v961 = vunpack.c.l.b16 %v623
        %v962 = vunpack.c.l.b16 %v624
        %v963 = vunpack.c.l.b16 %v625
        %v964 = vunpack.c.l.b16 %v626
        %v965 = vunpack.c.l.b16 %v627
        %v966 = vunpack.c.l.b16 %v628
        %v967 = vunpack.c.l.b16 %v629
        %v968 = vunpack.c.l.b16 %v630
        %v969 = vunpack.c.l.b16 %v631
        %v970 = vunpack.c.l.b16 %v632
        %v971 = vunpack.c.l.b16 %v633
        %v972 = vunpack.c.l.b16 %v634
        %v973 = vunpack.c.l.b16 %v635
        %v974 = vunpack.c.l.b16 %v636
        %v975 = vunpack.c.l.b16 %v637
        %v976 = vunpack.c.l.b16 %v638
        %v977 = vunpack.c.l.b16 %v639
        %v978 = vunpack.c.l.b16 %v640
        %v979 = vunpack.c.l.b16 %v641
        %v980 = vunpack.c.l.b16 %v642
        %v981 = vunpack.c.l.b16 %v643
        %v982 = vunpack.c.l.b16 %v644
        %v983 = vunpack.c.l.b16 %v645
        %v984 = vunpack.c.l.b16 %v646
        %v985 = vunpack.c.l.b16 %v647
        %v986 = vunpack.c.l.b16 %v648
        %v987 = vunpack.c.l.b16 %v649
        %v988 = vunpack.c.l.b16 %v650
        %v989 = vunpack.c.l.b16 %v651
        %v990 = vunpack.c.l.b16 %v652
        %v991 = vunpack.c.l.b16 %v653
        %v992 = vunpack.c.l.b16 %v654
        %v993 = vunpack.c.l.b16 %v655
        %v994 = vunpack.c.l.b16 %v656
        %v995 = vunpack.c.l.b16 %v657
        %v996 = vunpack.c.l.b16 %v658
        %v997 = vunpack.c.l.b16 %v659
        %v998 = vunpack.c.l.b16 %v660
        %v999 = vunpack.c.l.b16 %v661
        %v1000 = vunpack.c.l.b16 %v662
        %v1001 = vunpack.c.l.b16 %v663
        %v1002 = vunpack.c.l.b16 %v664
        %v1003 = vunpack.c.l.b16 %v665
        %v1004 = vunpack.c.l.b16 %v666
        %v1005 = vunpack.c.l.b16 %v667
        %v1006 = vunpack.c.l.b16 %v668
        %v1007 = vunpack.c.l.b16 %v669
        %v1008 = vunpack.c.l.b16 %v670
        %v1009 = vunpack.c.l.b16 %v671
        %v1010 = vunpack.c.l.b16 %v672
        %v1011 = vunpack.c.l.b16 %v673
        %v1012 = vunpack.c.l.b16 %v674
        %v1013 = vunpack.c.l.b16 %v675
        %v1014 = vunpack.c.l.b16 %v676
        %v1015 = vunpack.c.l.b16 %v677
        %v1016 = vunpack.c.l.b16 %v678
        %v1017 = vunpack.c.l.b16 %v679
        %v1018 = vunpack.c.l.b16 %v680
        %v1019 = vunpack.c.l.b16 %v681
        %v1020 = vunpack.c.l.b16 %v682
        %v1021 = vunpack.c.l.b16 %v683
        %v1022 = vunpack.c.l.b16 %v684
        %v1023 = vunpack.c.l.b16 %v685
        %v1024 = vunpack.c.l.b16 %v686
        %v1025 = vunpack.c.l.b16 %v687
        %v1026 = vunpack.c.l.b16 %v688
        %v1027 = vunpack.c.l.b16 %v689
        %v1028 = vunpack.c.l.b16 %v690
        %v1029 = vunpack.c.l.b16 %v691
        %v1030 = vunpack.c.l.b16 %v692
        %v1031 = vunpack.c.l.b16 %v693
        %v1032 = vunpack.c.l.b16 %v694
        %v1033 = vunpack.c.l.b16 %v695
        %v1034 = vunpack.c.l.b16 %v696
        %v1035 = vunpack.c.l.b16 %v697
        %v1036 = vunpack.c.l.b16 %v698
        %v1037 = vunpack.c.l.b16 %v699
        %v1038 = vunpack.c.l.b16 %v700
        %v1039 = vunpack.c.l.b16 %v701
        %v1040 = vunpack.c.l.b16 %v702
        %v1041 = vunpack.c.l.b16 %v703
        %v1042 = vunpack.c.l.b16 %v704
        %v1043 = vunpack.c.l.b16 %v705
        %v1044 = vunpack.c.l.b16 %v706
        %v1045 = vunpack.c.l.b16 %v707
        %v1046 = vpack.c.b16 %v903, %v902
        %v1047 = vpack.c.b16 %v905, %v904
        %v1048 = vpack.c.b16 %v907, %v906
        %v1049 = vpack.c.b16 %v909, %v908
        %v1050 = vpack.c.b16 %v911, %v910
        %v1051 = vpack.c.b16 %v913, %v912
        %v1052 = vpack.c.b16 %v915, %v914
        %v1053 = vpack.c.b16 %v917, %v916
        %v1054 = vpack.c.b16 %v919, %v918
        %v1055 = vpack.c.b16 %v921, %v920
        %v1056 = vpack.c.b16 %v923, %v922
        %v1057 = vpack.c.b16 %v925, %v924
        %v1058 = vpack.c.b16 %v927, %v926
        %v1059 = vpack.c.b16 %v929, %v928
        %v1060 = vpack.c.b16 %v931, %v930
        %v1061 = vpack.c.b16 %v933, %v932
        %v1062 = vpack.c.b16 %v935, %v934
        %v1063 = vpack.c.b16 %v937, %v936
        %v1064 = vpack.c.b16 %v939, %v938
        %v1065 = vpack.c.b16 %v941, %v940
        %v1066 = vpack.c.b16 %v943, %v942
        %v1067 = vpack.c.b16 %v945, %v944
        %v1068 = vpack.c.b16 %v947, %v946
        %v1069 = vpack.c.b16 %v949, %v948
        %v1070 = vpack.c.b16 %v951, %v950
        %v1071 = vpack.c.b16 %v953, %v952
        %v1072 = vpack.c.b16 %v955, %v954
        %v1073 = vpack.c.b16 %v957, %v956
        %v1074 = vpack.c.b16 %v959, %v958
        %v1075 = vpack.c.b16 %v961, %v960
        %v1076 = vpack.c.b16 %v963, %v962
        %v1077 = vpack.c.b16 %v965, %v964
        %v1078 = vpack.c.b16 %v967, %v966
        %v1079 = vpack.c.b16 %v969, %v968
        %v1080 = vpack.c.b16 %v971, %v970
        %v1081 = vpack.c.b16 %v973, %v972
        %v1082 = vpack.c.b16 %v975, %v974
        %v1083 = vpack.c.b16 %v977, %v976
        %v1084 = vpack.c.b16 %v979, %v978
        %v1085 = vpack.c.b16 %v981, %v980
        %v1086 = vpack.c.b16 %v983, %v982
        %v1087 = vpack.c.b16 %v985, %v984
        %v1088 = vpack.c.b16 %v987, %v986
        %v1089 = vpack.c.b16 %v989, %v988
        %v1090 = vpack.c.b16 %v991, %v990
        %v1091 = vpack.c.b16 %v993, %v992
        %v1092 = vpack.c.b16 %v995, %v994
        %v1093 = vpack.c.b16 %v997, %v996
        %v1094 = vpack.c.b16 %v999, %v998
        %v1095 = vpack.c.b16 %v1001, %v1000
        %v1096 = vpack.c.b16 %v1003, %v1002
        %v1097 = vpack.c.b16 %v1005, %v1004
        %v1098 = vpack.c.b16 %v1007, %v1006
        %v1099 = vpack.c.b16 %v1009, %v1008
        %v1100 = vpack.c.b16 %v1011, %v1010
        %v1101 = vpack.c.b16 %v1013, %v1012
        %v1102 = vpack.c.b16 %v1015, %v1014
        %v1103 = vpack.c.b16 %v1017, %v1016
        %v1104 = vpack.c.b16 %v1019, %v1018
        %v1105 = vpack.c.b16 %v1021, %v1020
        %v1106 = vpack.c.b16 %v1023, %v1022
        %v1107 = vpack.c.b16 %v1025, %v1024
        %v1108 = vpack.c.b16 %v1027, %v1026
        %v1109 = vpack.c.b16 %v1029, %v1028
        %v1110 = vpack.c.b16 %v1031, %v1030
        %v1111 = vpack.c.b16 %v1033, %v1032
        %v1112 = vpack.c.b16 %v1035, %v1034
        %v1113 = vpack.c.b16 %v1037, %v1036
        %v1114 = vpack.c.b16 %v1039, %v1038
        %v1115 = vpack.c.b16 %v1041, %v1040
        %v1116 = vpack.c.b16 %v1043, %v1042
        %v1117 = vpack.c.b16 %v1045, %v1044
        %1190 = vmatpush.bf16.msra.mxu0 %v1053
        %1191 = vmatpush.bf16.msra.mxu0 %v1052
        %1192 = vmatpush.bf16.msra.mxu0 %v1051
        %1193 = vmatpush.bf16.msra.mxu0 %v1050
        %1194 = vmatpush.bf16.msra.mxu0 %v1049
        %1195 = vmatpush.bf16.msra.mxu0 %v1048
        %1196 = vmatpush.bf16.msra.mxu0 %v1047
        %1197 = vmatpush.bf16.msra.mxu0 %v1046
        %1198 = vmatmul.bf16.gmra.mxu0 %v740
        %v1199 = vpop.f32.mrf.mxu0
        %v1200 = vadd.f32 %v710, %v1199
        %v1201 = vpop.f32.mrf.mxu0
        %v1202 = vadd.f32 %v710, %v1201
        %1203 = vdwg.mxu0
        %1204 = vmatpush.bf16.msra.mxu0 %v1061
        %1205 = vmatpush.bf16.msra.mxu0 %v1060
        %1206 = vmatpush.bf16.msra.mxu0 %v1059
        %1207 = vmatpush.bf16.msra.mxu0 %v1058
        %1208 = vmatpush.bf16.msra.mxu0 %v1057
        %1209 = vmatpush.bf16.msra.mxu0 %v1056
        %1210 = vmatpush.bf16.msra.mxu0 %v1055
        %1211 = vmatpush.bf16.msra.mxu0 %v1054
        %1212 = vmatmul.bf16.gmra.mxu0 %v741
        %v1213 = vpop.f32.mrf.mxu0
        %v1214 = vadd.f32 %v1200, %v1213
        %v1215 = vpop.f32.mrf.mxu0
        %v1216 = vadd.f32 %v1202, %v1215
        %1217 = vdwg.mxu0
        %1218 = vmatpush.bf16.msra.mxu0 %v1069
        %1219 = vmatpush.bf16.msra.mxu0 %v1068
        %1220 = vmatpush.bf16.msra.mxu0 %v1067
        %1221 = vmatpush.bf16.msra.mxu0 %v1066
        %1222 = vmatpush.bf16.msra.mxu0 %v1065
        %1223 = vmatpush.bf16.msra.mxu0 %v1064
        %1224 = vmatpush.bf16.msra.mxu0 %v1063
        %1225 = vmatpush.bf16.msra.mxu0 %v1062
        %1226 = vmatmul.bf16.gmra.mxu0 %v742
        %v1227 = vpop.f32.mrf.mxu0
        %v1228 = vadd.f32 %v1214, %v1227
        %v1229 = vpop.f32.mrf.mxu0
        %v1230 = vadd.f32 %v1216, %v1229
        %1231 = vdwg.mxu0
        %1232 = vmatpush.bf16.msra.mxu0 %v1077
        %1233 = vmatpush.bf16.msra.mxu0 %v1076
        %1234 = vmatpush.bf16.msra.mxu0 %v1075
        %1235 = vmatpush.bf16.msra.mxu0 %v1074
        %1236 = vmatpush.bf16.msra.mxu0 %v1073
        %1237 = vmatpush.bf16.msra.mxu0 %v1072
        %1238 = vmatpush.bf16.msra.mxu0 %v1071
        %1239 = vmatpush.bf16.msra.mxu0 %v1070
        %1240 = vmatmul.bf16.gmra.mxu0 %v743
        %v1241 = vpop.f32.mrf.mxu0
        %v1242 = vadd.f32 %v1228, %v1241
        %v1243 = vpop.f32.mrf.mxu0
        %v1244 = vadd.f32 %v1230, %v1243
        %1245 = vdwg.mxu0
        %1246 = vmatpush.bf16.msra.mxu0 %v1085
        %1247 = vmatpush.bf16.msra.mxu0 %v1084
        %1248 = vmatpush.bf16.msra.mxu0 %v1083
        %1249 = vmatpush.bf16.msra.mxu0 %v1082
        %1250 = vmatpush.bf16.msra.mxu0 %v1081
        %1251 = vmatpush.bf16.msra.mxu0 %v1080
        %1252 = vmatpush.bf16.msra.mxu0 %v1079
        %1253 = vmatpush.bf16.msra.mxu0 %v1078
        %1254 = vmatmul.bf16.gmra.mxu0 %v744
        %v1255 = vpop.f32.mrf.mxu0
        %v1256 = vadd.f32 %v1242, %v1255
        %v1257 = vpop.f32.mrf.mxu0
        %v1258 = vadd.f32 %v1244, %v1257
        %1259 = vdwg.mxu0
        %1260 = vmatpush.bf16.msra.mxu0 %v1093
        %1261 = vmatpush.bf16.msra.mxu0 %v1092
        %1262 = vmatpush.bf16.msra.mxu0 %v1091
        %1263 = vmatpush.bf16.msra.mxu0 %v1090
        %1264 = vmatpush.bf16.msra.mxu0 %v1089
        %1265 = vmatpush.bf16.msra.mxu0 %v1088
        %1266 = vmatpush.bf16.msra.mxu0 %v1087
        %1267 = vmatpush.bf16.msra.mxu0 %v1086
        %1268 = vmatmul.bf16.gmra.mxu0 %v745
        %v1269 = vpop.f32.mrf.mxu0
        %v1270 = vadd.f32 %v1256, %v1269
        %v1271 = vpop.f32.mrf.mxu0
        %v1272 = vadd.f32 %v1258, %v1271
        %1273 = vdwg.mxu0
        %1274 = vmatpush.bf16.msra.mxu0 %v1101
        %1275 = vmatpush.bf16.msra.mxu0 %v1100
        %1276 = vmatpush.bf16.msra.mxu0 %v1099
        %1277 = vmatpush.bf16.msra.mxu0 %v1098
        %1278 = vmatpush.bf16.msra.mxu0 %v1097
        %1279 = vmatpush.bf16.msra.mxu0 %v1096
        %1280 = vmatpush.bf16.msra.mxu0 %v1095
        %1281 = vmatpush.bf16.msra.mxu0 %v1094
        %1282 = vmatmul.bf16.gmra.mxu0 %v746
        %v1283 = vpop.f32.mrf.mxu0
        %v1284 = vadd.f32 %v1270, %v1283
        %v1285 = vpop.f32.mrf.mxu0
        %v1286 = vadd.f32 %v1272, %v1285
        %1287 = vdwg.mxu0
        %1288 = vmatpush.bf16.msra.mxu0 %v1109
        %1289 = vmatpush.bf16.msra.mxu0 %v1108
        %1290 = vmatpush.bf16.msra.mxu0 %v1107
        %1291 = vmatpush.bf16.msra.mxu0 %v1106
        %1292 = vmatpush.bf16.msra.mxu0 %v1105
        %1293 = vmatpush.bf16.msra.mxu0 %v1104
        %1294 = vmatpush.bf16.msra.mxu0 %v1103
        %1295 = vmatpush.bf16.msra.mxu0 %v1102
        %1296 = vmatmul.bf16.gmra.mxu0 %v747
        %v1297 = vpop.f32.mrf.mxu0
        %v1298 = vadd.f32 %v1284, %v1297
        %v1299 = vpop.f32.mrf.mxu0
        %v1300 = vadd.f32 %v1286, %v1299
        %1301 = vdwg.mxu0
        %1302 = vmatpush.bf16.msra.mxu0 %v1117
        %1303 = vmatpush.bf16.msra.mxu0 %v1116
        %1304 = vmatpush.bf16.msra.mxu0 %v1115
        %1305 = vmatpush.bf16.msra.mxu0 %v1114
        %1306 = vmatpush.bf16.msra.mxu0 %v1113
        %1307 = vmatpush.bf16.msra.mxu0 %v1112
        %1308 = vmatpush.bf16.msra.mxu0 %v1111
        %1309 = vmatpush.bf16.msra.mxu0 %v1110
        %1310 = vmatmul.bf16.gmra.mxu0 %v748
        %v1311 = vpop.f32.mrf.mxu0
        %v1312 = vadd.f32 %v1298, %v1311
        %v1313 = vpop.f32.mrf.mxu0
        %v1314 = vadd.f32 %v1300, %v1313
        %1315 = vdwg.mxu0
        %1316 = vst [vmem:[%s305] sm:$0xff] %v1312
        %1317 = vst [vmem:[%s305 + $0x8] sm:$0xff] %v1314
        %s1318 = sand.u32 %s183, 1
        %s1319 = scalar_lea.sflag [#allocation5], %s1318
        %s1320 = sand.u32 %s183, 1
        %s1321 = smul.addr %s1320, 16
        %s1322 = scalar_lea.vmem [#allocation8], %s1321
        // Predicated region
        $region57: #{tpu_custom_call.1} parent=47 // pred_check
          %p1323 = pneg %p193
        $region58: #{tpu_custom_call.1} parent=47 // pred_check_branch
          %1325 = sbr.rel (%p1323) target = $region60
        $region59: #{tpu_custom_call.1} parent=47 // pred_region
          %1327 = vsyncadd %s1319, 0
          %s1328 = smul.addr %s23, 2
          %s1329 = smul.addr %s1328, 8
          %s1330 = scalar_lea.hbm %s7, %s1329
          %s1331 = sshll.u32 %s1322, 4
          %s1332 = int_to_ptr.vmem [resolvable:$true] %s1331
          %s1333 = sshll.u32 %s1330, 4
          %s1334 = int_to_ptr.hbm [resolvable:$true] %s1333
          %1339 = dma.vmem_to_hbm [thread:$0]  %s1332, 256, %s1334, %s1319, 128, 128, 8
        $region60: #{tpu_custom_call.1} parent=47 // pred_fallthru
          _
      $region48: #{tpu_custom_call.1} parent=5 // pred_fallthru
        _
      %p1340 = scmp.le.s32.totalorder 2, %s18
      // Predicated region
      $region61: #{tpu_custom_call.1} parent=5 // pred_check
        %p1341 = pneg %p1340
      $region62: #{tpu_custom_call.1} parent=5 // pred_check_branch
        %1343 = sbr.rel (%p1341) target = $region64
      $region63: #{tpu_custom_call.1} parent=5 // pred_region
        %s1344 = ssub.s32 %s18, 2
        // Predicated region
        $region65: #{tpu_custom_call.1} parent=63 // pred_check
          %p1345 = pneg %p199
        $region66: #{tpu_custom_call.1} parent=63 // pred_check_branch
          %1347 = sbr.rel (%p1345) target = $region68
        $region67: #{tpu_custom_call.1} parent=63 // pred_region
          %s1348 = sand.u32 %s184, 1
          %s1349 = scalar_lea.sflag [#allocation5], %s1348
          %s1350 = sand.u32 %s184, 1
          %s1351 = smul.addr %s1350, 16
          %s1352 = scalar_lea.vmem [#allocation8], %s1351
          %1354 = dma.done %s1349, 256
        $region68: #{tpu_custom_call.1} parent=63 // pred_fallthru
          _
      $region64: #{tpu_custom_call.1} parent=5 // pred_fallthru
        _
    $region6: #{tpu_custom_call.1} parent=1 // loop_footer
      %s22 = sadd.s32 1, %s18
    $region7: #{tpu_custom_call.1} parent=1 // loop_footer_branch
      %17 = sbr.rel target = $region3
    $region8: #{tpu_custom_call.1} parent=1 // loop_exit
      _
    %1355 = vsyncpa [#allocation4], 1
    %s1356 = scalar_lea.sflag [#allocation4], 1
    %1357 = vsyncpa %s1356, 1
    %1358 = vsyncpa [#allocation7], 1
    %1359 = vsyncpa [#allocation5], 1
    %s1360 = scalar_lea.sflag [#allocation5], 1
    %1361 = vsyncpa %s1360, 1

</llo_original>
